<compile_context>
chip_gen: v7x
topology: tpu7x:2x2x1
jax: 0.10.0
libtpu: 0.0.40
codegen_flags: <defaults>
</compile_context>

<pallas_src>
import functools

import jax
import jax.numpy as jnp
from jax.experimental import pallas as pl
from jax.experimental.pallas import tpu as pltpu

LANE = 128   # vreg lane width — feature dims are zero-padded up to this
SUBLANE = 8  # sublane granularity — batch tiles are multiples of this


# ----------------------------- configuration --------------------------------
class Args:
    noise_size = 16
    image_size = 64
    generator_structure = [16, 32, 64]          # [noise_size, ..., image_size]
    generator_activation = "Relu"               # 'Relu' or 'LeakyRelu'
    generator_dropout = 0.0                     # identity at 0.0
    # TODO(synk): nn.Dropout with p>0 (training-mode RNG masking) is not
    # implemented; the reference config uses dropout=0.0 (identity).


def _round_up(x, m):
    return (x + m - 1) // m * m


def _num_tensorcores():
    """TensorCores visible behind one JAX device (v7x megacore = 2, else 1)."""
    try:
        kind = jax.devices()[0].device_kind.lower()
    except Exception:
        return 1
    if "v7" in kind or "v4" in kind:
        return 2
    return 1


# ------------------------------ Pallas kernel --------------------------------
def _activate(h, activation):
    if activation == "Relu":
        return jnp.maximum(h, 0.0)
    elif activation == "LeakyRelu":
        # PyTorch nn.LeakyReLU default negative_slope = 0.01
        return jnp.where(h >= 0.0, h, 0.01 * h)
    return h


def _mlp_kernel(x_ref, w_ref, b_ref, out_ref, *, num_layers, activation):
    # x_ref:   (tb, dp)       compute dtype (bf16)
    # w_ref:   (L, dp, dp)    compute dtype — zero padded, so full-width matmul
    #                         is exact (padded cols of h stay 0 through ReLU)
    # b_ref:   (L, 1, dp)     f32
    # out_ref: (tb, dp)       out dtype (bf16)
    cdt = x_ref.dtype
    h = x_ref[...]
    for layer in range(num_layers):
        # MXU: bf16 operands, f32 accumulation.
        acc = jnp.dot(h, w_ref[layer], preferred_element_type=jnp.float32)
        # Bias + activation in f32 on the VPU (filler under the MXU).
        acc = _activate(acc + b_ref[layer], activation)
        h = acc.astype(cdt) if layer < num_layers - 1 else acc
    out_ref[...] = h.astype(out_ref.dtype)


# ------------------------- parameter preparation (hoisted) -------------------
def pad_params(weights, biases, compute_dtype=jnp.bfloat16):
    """One-time: zero-pad every layer to (dp, dp) lanes, cast to the MXU
    compute dtype, and stack into single weight / bias slabs."""
    cdt = jnp.dtype(compute_dtype)
    dims = tuple((int(w.shape[0]), int(w.shape[1])) for w in weights)
    dp = max(max(_round_up(di, LANE), _round_up(do, LANE)) for di, do in dims)
    L = len(weights)
    w_stack = jnp.zeros((L, dp, dp), cdt)
    b_stack = jnp.zeros((L, 1, dp), jnp.float32)
    for l, (w, b) in enumerate(zip(weights, biases)):
        di, do = dims[l]
        w_stack = w_stack.at[l, :di, :do].set(w.astype(cdt))
        b_stack = b_stack.at[l, :, :do].set(b.astype(jnp.float32))
    return w_stack, b_stack, dims


# --------------------------------- forward -----------------------------------
@functools.partial(
    jax.jit,
    static_argnames=("dims", "activation", "out_dtype", "batch_tile", "num_cores"))
def generator_forward(noise, w_stack, b_stack, *, dims, activation="Relu",
                      out_dtype=jnp.bfloat16, batch_tile=None, num_cores=None):
    """Fused MLP generator forward pass as a single Pallas TPU kernel.

    noise:   (B, noise_size) float32
    w_stack: (L, dp, dp) compute-dtype padded weight slab (from pad_params)
    b_stack: (L, 1, dp)  f32 padded bias slab             (from pad_params)
    """
    B, d_in = noise.shape
    L, dp, _ = w_stack.shape
    cdt = w_stack.dtype
    d_out = dims[-1][1]
    assert d_in == dims[0][0]

    # ---- grid selection: one step per TensorCore, tile capped at 1024 rows ----
    if num_cores is None:
        num_cores = _num_tensorcores()
    if batch_tile is None:
        tb = _round_up(max(-(-B // num_cores), 1), SUBLANE)
        tb = min(tb, 1024)
    else:
        tb = _round_up(min(batch_tile, max(B, 1)), SUBLANE)
    tb = max(tb, SUBLANE)
    B_p = _round_up(B, tb)
    grid = (B_p // tb,)

    # Only the (cheap) noise pad stays on the hot path; it fuses under jit.
    x = jnp.zeros((B_p, dp), cdt).at[:B, :d_in].set(noise.astype(cdt))

    kernel = functools.partial(_mlp_kernel, num_layers=L, activation=activation)

    # Real (unpadded) FLOPs, padded bytes.
    flops = 2 * B * sum(di * do for di, do in dims)
    bytes_accessed = (B_p * dp * cdt.itemsize
                      + B_p * dp * jnp.dtype(out_dtype).itemsize
                      + w_stack.size * cdt.itemsize
                      + b_stack.size * 4)

    out_padded = pl.pallas_call(
        kernel,
        out_shape=jax.ShapeDtypeStruct((B_p, dp), out_dtype),
        grid=grid,
        in_specs=[
            pl.BlockSpec((tb, dp), lambda i: (i, 0)),        # batch-tiled input
            pl.BlockSpec((L, dp, dp), lambda i: (0, 0, 0)),  # resident weights
            pl.BlockSpec((L, 1, dp), lambda i: (0, 0, 0)),   # resident biases
        ],
        out_specs=pl.BlockSpec((tb, dp), lambda i: (i, 0)),
        compiler_params=pltpu.CompilerParams(
            dimension_semantics=("parallel",)),
        cost_estimate=pl.CostEstimate(flops=flops, transcendentals=0,
                                      bytes_accessed=bytes_accessed),
    )(x, w_stack, b_stack)

    # Slice off batch / feature padding (fuses under jit).
    return out_padded[:B, :d_out]


# --------------------------- parameter construction --------------------------
def init_generator_params(key, structure):
    """Deterministic init of Linear layers.  Returns ((in,out) weights, (1,out) biases)."""
    weights, biases = [], []
    for idx, (dim_in, dim_out) in enumerate(zip(structure[:-1], structure[1:])):
        kw, kb, key = jax.random.split(jax.random.fold_in(key, idx), 3)
        bound = 1.0 / jnp.sqrt(dim_in)   # PyTorch Linear default U(-1/sqrt(in), 1/sqrt(in))
        w = jax.random.uniform(kw, (dim_in, dim_out), jnp.float32, -bound, bound)
        b = jax.random.uniform(kb, (1, dim_out), jnp.float32, -bound, bound)
        weights.append(w)
        biases.append(b)
    return weights, biases


def generator_reference(noise, weights, biases, activation="Relu",
                        compute_dtype=jnp.float32):
    """Plain-XLA reference.  compute_dtype=f32 is exact PyTorch semantics;
    bf16 mirrors the kernel's mixed-precision choice."""
    cdt = jnp.dtype(compute_dtype)
    h = noise.astype(cdt)
    for i, (w, b) in enumerate(zip(weights, biases)):
        acc = jnp.dot(h, w.astype(cdt), preferred_element_type=jnp.float32)
        acc = _activate(acc + b.astype(jnp.float32), activation)
        h = acc.astype(cdt) if i < len(weights) - 1 else acc
    return h


# ----------------------------------- main ------------------------------------
if __name__ == "__main__":
    args = Args()
    assert args.generator_structure[0] == args.noise_size
    assert args.generator_structure[-1] == args.image_size

    key = jax.random.PRNGKey(0)
    k_noise, k_params = jax.random.split(key)

    B = 256
    noise = jax.random.normal(k_noise, (B, args.noise_size), dtype=jnp.float32)
    weights, biases = init_generator_params(k_params, args.generator_structure)

    # ---- hoisted, one-time padding / bf16 cast of parameters ----
    w_stack, b_stack, dims = pad_params(weights, biases, compute_dtype=jnp.bfloat16)
    w_stack = jax.device_put(w_stack)
    b_stack = jax.device_put(b_stack)

    # ---- fused forward: bf16 MXU operands + bf16 output, f32 accumulate ----
    out = generator_forward(noise, w_stack, b_stack, dims=dims,
                            activation=args.generator_activation,
                            out_dtype=jnp.bfloat16)
    out = jax.block_until_ready(out)
    assert out.shape == (B, args.image_size)
    assert out.dtype == jnp.bfloat16

    # Matches the identically-cast XLA reference closely...
    ref_bf16 = generator_reference(noise, weights, biases,
                                   activation=args.generator_activation,
                                   compute_dtype=jnp.bfloat16).astype(jnp.bfloat16)
    out_f32 = out.astype(jnp.float32)
    assert jnp.allclose(out_f32, ref_bf16.astype(jnp.float32),
                        atol=1e-2, rtol=1e-2), "bf16 path mismatch"

    # ...and the full-f32 PyTorch-semantics reference within bf16 tolerance.
    ref_f32 = generator_reference(noise, weights, biases,
                                  activation=args.generator_activation,
                                  compute_dtype=jnp.float32)
    assert jnp.allclose(out_f32, ref_f32, atol=5e-2, rtol=5e-2), "bf16 vs f32 ref drift"

    print("KERNEL_OK")
</pallas_src>

<mosaic_0001>
module attributes {stable_mosaic.version = 11 : i64} {
  func.func @_mlp_kernel(%arg0: i32, %arg1: memref<256x128xbf16, #tpu.memory_space<vmem>>, %arg2: memref<2x128x128xbf16, #tpu.memory_space<vmem>>, %arg3: memref<2x1x128xf32, #tpu.memory_space<vmem>>, %arg4: memref<256x128xbf16, #tpu.memory_space<vmem>>) attributes {dimension_semantics = [#tpu.dimension_semantics<parallel>], iteration_bounds = array<i64: 1>, scalar_prefetch = 0 : i64, scratch_operands = 0 : i64, tpu.core_type = #tpu.core_type<tc>, window_params = [{transform_indices = @transform_0, window_bounds = array<i64: 256, 128>}, {pipeline_mode = #tpu.pipeline_mode<synchronous>, transform_indices = @transform_1, window_bounds = array<i64: 2, 128, 128>}, {pipeline_mode = #tpu.pipeline_mode<synchronous>, transform_indices = @transform_2, window_bounds = array<i64: 2, 1, 128>}, {transform_indices = @transform_3, window_bounds = array<i64: 256, 128>}]} {
    %c0 = arith.constant 0 : index
    %c0_0 = arith.constant 0 : index
    %0 = vector.load %arg1[%c0, %c0_0] : memref<256x128xbf16, #tpu.memory_space<vmem>>, vector<256x128xbf16>
    %c0_1 = arith.constant 0 : index
    %c0_2 = arith.constant 0 : index
    %c0_3 = arith.constant 0 : index
    %1 = vector.load %arg2[%c0_1, %c0_2, %c0_3] : memref<2x128x128xbf16, #tpu.memory_space<vmem>>, vector<1x128x128xbf16>
    %2 = vector.shape_cast %1 : vector<1x128x128xbf16> to vector<128x128xbf16>
    %cst = arith.constant dense<0.000000e+00> : vector<256x128xf32>
    %3 = tpu.matmul %0, %2, %cst {dimension_numbers = #tpu.dot_dimension_numbers<[1], [0], [0], [1], [0, 0, 1, 1], [], []>} : vector<256x128xbf16>, vector<128x128xbf16>, vector<256x128xf32> -> vector<256x128xf32>
    %c0_4 = arith.constant 0 : index
    %c0_5 = arith.constant 0 : index
    %c0_6 = arith.constant 0 : index
    %4 = vector.load %arg3[%c0_4, %c0_5, %c0_6] : memref<2x1x128xf32, #tpu.memory_space<vmem>>, vector<1x1x128xf32>
    %5 = vector.shape_cast %4 : vector<1x1x128xf32> to vector<1x128xf32>
    %6 = vector.broadcast %5 : vector<1x128xf32> to vector<256x128xf32>
    %7 = arith.addf %3, %6 : vector<256x128xf32>
    %cst_7 = arith.constant 0.000000e+00 : f32
    %8 = vector.broadcast %cst_7 : f32 to vector<256x128xf32>
    %9 = arith.maximumf %7, %8 : vector<256x128xf32>
    %10 = arith.truncf %9 : vector<256x128xf32> to vector<256x128xbf16>
    %c1 = arith.constant 1 : index
    %c0_8 = arith.constant 0 : index
    %c0_9 = arith.constant 0 : index
    %11 = vector.load %arg2[%c1, %c0_8, %c0_9] : memref<2x128x128xbf16, #tpu.memory_space<vmem>>, vector<1x128x128xbf16>
    %12 = vector.shape_cast %11 : vector<1x128x128xbf16> to vector<128x128xbf16>
    %cst_10 = arith.constant dense<0.000000e+00> : vector<256x128xf32>
    %13 = tpu.matmul %10, %12, %cst_10 {dimension_numbers = #tpu.dot_dimension_numbers<[1], [0], [0], [1], [0, 0, 1, 1], [], []>} : vector<256x128xbf16>, vector<128x128xbf16>, vector<256x128xf32> -> vector<256x128xf32>
    %c1_11 = arith.constant 1 : index
    %c0_12 = arith.constant 0 : index
    %c0_13 = arith.constant 0 : index
    %14 = vector.load %arg3[%c1_11, %c0_12, %c0_13] : memref<2x1x128xf32, #tpu.memory_space<vmem>>, vector<1x1x128xf32>
    %15 = vector.shape_cast %14 : vector<1x1x128xf32> to vector<1x128xf32>
    %16 = vector.broadcast %15 : vector<1x128xf32> to vector<256x128xf32>
    %17 = arith.addf %13, %16 : vector<256x128xf32>
    %cst_14 = arith.constant 0.000000e+00 : f32
    %18 = vector.broadcast %cst_14 : f32 to vector<256x128xf32>
    %19 = arith.maximumf %17, %18 : vector<256x128xf32>
    %20 = arith.truncf %19 : vector<256x128xf32> to vector<256x128xbf16>
    %c0_15 = arith.constant 0 : index
    %c0_16 = arith.constant 0 : index
    %21 = vector.load %arg4[%c0_15, %c0_16] : memref<256x128xbf16, #tpu.memory_space<vmem>>, vector<256x128xbf16>
    tpu.vector_store %arg4[%c0_15, %c0_16], %20 {strides = array<i32>} : memref<256x128xbf16, #tpu.memory_space<vmem>>, vector<256x128xbf16>,
    return
  }
  func.func @transform_0(%arg0: i32) -> (i32, i32) {
    %c0_i32 = arith.constant 0 : i32
    %c0_i32_0 = arith.constant 0 : i32
    return %arg0, %c0_i32 : i32, i32
  }
  func.func @transform_1(%arg0: i32) -> (i32, i32, i32) {
    %c0_i32 = arith.constant 0 : i32
    %c0_i32_0 = arith.constant 0 : i32
    %c0_i32_1 = arith.constant 0 : i32
    %c0_i32_2 = arith.constant 0 : i32
    return %c0_i32, %c0_i32_0, %c0_i32_1 : i32, i32, i32
  }
  func.func @transform_2(%arg0: i32) -> (i32, i32, i32) {
    %c0_i32 = arith.constant 0 : i32
    %c0_i32_0 = arith.constant 0 : i32
    %c0_i32_1 = arith.constant 0 : i32
    %c0_i32_2 = arith.constant 0 : i32
    return %c0_i32, %c0_i32_0, %c0_i32_1 : i32, i32, i32
  }
  func.func @transform_3(%arg0: i32) -> (i32, i32) {
    %c0_i32 = arith.constant 0 : i32
    %c0_i32_0 = arith.constant 0 : i32
    return %arg0, %c0_i32 : i32, i32
  }
}

</mosaic_0001>

<llo_original>
// kernel: generator_forward.1
$region0: #{generator_forward.1}
  #allocation0 [shape = 'u32[]', space=smem, size = 0x4, offset = 0x4, fixed_abs, tag = 'smem constant byte address 0x4 - core index']
  #allocation1 [shape = 'u32[144,128]{1,0:T(1,128)}', space=vmem, size = 0x12000, scoped, tag = 'internal scratch']
  %s0 = inlined_call_operand.vmem [shape: bf16[256,128], index: 0, kind: input, shape index: {}]
  %s1 = inlined_call_operand.vmem [shape: bf16[2,128,128], index: 1, kind: input, shape index: {}]
  %s2 = inlined_call_operand.vmem [shape: f32[2,1,128], index: 2, kind: input, shape index: {}]
  %s3 = inlined_call_operand.vmem [shape: bf16[256,128], index: 3, kind: output, shape index: {}]
  %s4 = sld [smem:[#allocation0]]
  $region22: #{generator_forward.1} parent=0
    _
  %s6 = ssub.s32 1, %s4
  %s7 = scalar_select 0, %s6, %s4
  // Predicated region
  $region2: #{generator_forward.1} parent=0 // pred_check
    _
  $region3: #{generator_forward.1} parent=0 // pred_check_branch
    %9 = sbr.rel (0) target = $region5
  $region4: #{generator_forward.1} parent=0 // pred_region
    _
  $region5: #{generator_forward.1} parent=0 // pred_fallthru
    _
  // Predicated region
  $region6: #{generator_forward.1} parent=0 // pred_check
    _
  $region7: #{generator_forward.1} parent=0 // pred_check_branch
    %11 = sbr.rel (0) target = $region9
  $region8: #{generator_forward.1} parent=0 // pred_region
    _
  $region9: #{generator_forward.1} parent=0 // pred_fallthru
    _
  // Predicated region
  $region10: #{generator_forward.1} parent=0 // pred_check
    _
  $region11: #{generator_forward.1} parent=0 // pred_check_branch
    %13 = sbr.rel (0) target = $region13
  $region12: #{generator_forward.1} parent=0 // pred_region
    _
  $region13: #{generator_forward.1} parent=0 // pred_fallthru
    _
  %v15 = vld [vmem:[%s0] sm:$0xf]
  %v16 = vld [vmem:[%s0 + $0x4] sm:$0xf]
  %v17 = vld [vmem:[%s0 + $0x8] sm:$0xf]
  %v18 = vld [vmem:[%s0 + $0xc] sm:$0xf]
  %v19 = vld [vmem:[%s0 + $0x10] sm:$0xf]
  %v20 = vld [vmem:[%s0 + $0x14] sm:$0xf]
  %v21 = vld [vmem:[%s0 + $0x18] sm:$0xf]
  %v22 = vld [vmem:[%s0 + $0x1c] sm:$0xf]
  %v23 = vld [vmem:[%s0 + $0x20] sm:$0xf]
  %v24 = vld [vmem:[%s0 + $0x24] sm:$0xf]
  %v25 = vld [vmem:[%s0 + $0x28] sm:$0xf]
  %v26 = vld [vmem:[%s0 + $0x2c] sm:$0xf]
  %v27 = vld [vmem:[%s0 + $0x30] sm:$0xf]
  %v28 = vld [vmem:[%s0 + $0x34] sm:$0xf]
  %v29 = vld [vmem:[%s0 + $0x38] sm:$0xf]
  %v30 = vld [vmem:[%s0 + $0x3c] sm:$0xf]
  %v31 = vld [vmem:[%s0 + $0x40] sm:$0xf]
  %v32 = vld [vmem:[%s0 + $0x44] sm:$0xf]
  %v33 = vld [vmem:[%s0 + $0x48] sm:$0xf]
  %v34 = vld [vmem:[%s0 + $0x4c] sm:$0xf]
  %v35 = vld [vmem:[%s0 + $0x50] sm:$0xf]
  %v36 = vld [vmem:[%s0 + $0x54] sm:$0xf]
  %v37 = vld [vmem:[%s0 + $0x58] sm:$0xf]
  %v38 = vld [vmem:[%s0 + $0x5c] sm:$0xf]
  %v39 = vld [vmem:[%s0 + $0x60] sm:$0xf]
  %v40 = vld [vmem:[%s0 + $0x64] sm:$0xf]
  %v41 = vld [vmem:[%s0 + $0x68] sm:$0xf]
  %v42 = vld [vmem:[%s0 + $0x6c] sm:$0xf]
  %v43 = vld [vmem:[%s0 + $0x70] sm:$0xf]
  %v44 = vld [vmem:[%s0 + $0x74] sm:$0xf]
  %v45 = vld [vmem:[%s0 + $0x78] sm:$0xf]
  %v46 = vld [vmem:[%s0 + $0x7c] sm:$0xf]
  %v47 = vld [vmem:[%s1] sm:$0xf]
  %v48 = vld [vmem:[%s1 + $0x4] sm:$0xf]
  %v49 = vld [vmem:[%s1 + $0x8] sm:$0xf]
  %v50 = vld [vmem:[%s1 + $0xc] sm:$0xf]
  %v51 = vld [vmem:[%s1 + $0x10] sm:$0xf]
  %v52 = vld [vmem:[%s1 + $0x14] sm:$0xf]
  %v53 = vld [vmem:[%s1 + $0x18] sm:$0xf]
  %v54 = vld [vmem:[%s1 + $0x1c] sm:$0xf]
  %v55 = vld [vmem:[%s1 + $0x20] sm:$0xf]
  %v56 = vld [vmem:[%s1 + $0x24] sm:$0xf]
  %v57 = vld [vmem:[%s1 + $0x28] sm:$0xf]
  %v58 = vld [vmem:[%s1 + $0x2c] sm:$0xf]
  %v59 = vld [vmem:[%s1 + $0x30] sm:$0xf]
  %v60 = vld [vmem:[%s1 + $0x34] sm:$0xf]
  %v61 = vld [vmem:[%s1 + $0x38] sm:$0xf]
  %v62 = vld [vmem:[%s1 + $0x3c] sm:$0xf]
  %v63 = vld [vmem:[%s2] sm:$0x1]
  %v65 = vlaneseq
  %v66 = vshrl.u32 %v65, 7
  %v67 = vsub.s32 0, %v66
  %v68 = vrot.slane %v63, %v67
  %v102 = vunpack.c.l.b16 %v15
  %v103 = vunpack.c.l.b16 %v16
  %v104 = vunpack.c.l.b16 %v17
  %v105 = vunpack.c.l.b16 %v18
  %v106 = vunpack.c.l.b16 %v19
  %v107 = vunpack.c.l.b16 %v20
  %v108 = vunpack.c.l.b16 %v21
  %v109 = vunpack.c.l.b16 %v22
  %v110 = vunpack.c.l.b16 %v23
  %v111 = vunpack.c.l.b16 %v24
  %v112 = vunpack.c.l.b16 %v25
  %v113 = vunpack.c.l.b16 %v26
  %v114 = vunpack.c.l.b16 %v27
  %v115 = vunpack.c.l.b16 %v28
  %v116 = vunpack.c.l.b16 %v29
  %v117 = vunpack.c.l.b16 %v30
  %v118 = vunpack.c.l.b16 %v31
  %v119 = vunpack.c.l.b16 %v32
  %v120 = vunpack.c.l.b16 %v33
  %v121 = vunpack.c.l.b16 %v34
  %v122 = vunpack.c.l.b16 %v35
  %v123 = vunpack.c.l.b16 %v36
  %v124 = vunpack.c.l.b16 %v37
  %v125 = vunpack.c.l.b16 %v38
  %v126 = vunpack.c.l.b16 %v39
  %v127 = vunpack.c.l.b16 %v40
  %v128 = vunpack.c.l.b16 %v41
  %v129 = vunpack.c.l.b16 %v42
  %v130 = vunpack.c.l.b16 %v43
  %v131 = vunpack.c.l.b16 %v44
  %v132 = vunpack.c.l.b16 %v45
  %v133 = vunpack.c.l.b16 %v46
  %v134 = vpack.c.b16 %v103, %v102
  %v135 = vpack.c.b16 %v105, %v104
  %v136 = vpack.c.b16 %v107, %v106
  %v137 = vpack.c.b16 %v109, %v108
  %v138 = vpack.c.b16 %v111, %v110
  %v139 = vpack.c.b16 %v113, %v112
  %v140 = vpack.c.b16 %v115, %v114
  %v141 = vpack.c.b16 %v117, %v116
  %v142 = vpack.c.b16 %v119, %v118
  %v143 = vpack.c.b16 %v121, %v120
  %v144 = vpack.c.b16 %v123, %v122
  %v145 = vpack.c.b16 %v125, %v124
  %v146 = vpack.c.b16 %v127, %v126
  %v147 = vpack.c.b16 %v129, %v128
  %v148 = vpack.c.b16 %v131, %v130
  %v149 = vpack.c.b16 %v133, %v132
  %v182 = vunpack.c.l.b16 %v47
  %v183 = vunpack.c.l.b16 %v48
  %v184 = vunpack.c.l.b16 %v49
  %v185 = vunpack.c.l.b16 %v50
  %v186 = vunpack.c.l.b16 %v51
  %v187 = vunpack.c.l.b16 %v52
  %v188 = vunpack.c.l.b16 %v53
  %v189 = vunpack.c.l.b16 %v54
  %v190 = vunpack.c.l.b16 %v55
  %v191 = vunpack.c.l.b16 %v56
  %v192 = vunpack.c.l.b16 %v57
  %v193 = vunpack.c.l.b16 %v58
  %v194 = vunpack.c.l.b16 %v59
  %v195 = vunpack.c.l.b16 %v60
  %v196 = vunpack.c.l.b16 %v61
  %v197 = vunpack.c.l.b16 %v62
  %v198 = vpack.c.b16 %v183, %v182
  %v199 = vpack.c.b16 %v185, %v184
  %v200 = vpack.c.b16 %v187, %v186
  %v201 = vpack.c.b16 %v189, %v188
  %v202 = vpack.c.b16 %v191, %v190
  %v203 = vpack.c.b16 %v193, %v192
  %v204 = vpack.c.b16 %v195, %v194
  %v205 = vpack.c.b16 %v197, %v196
  %214 = vmatprep.subr.bf16.mxu0 0
  %215 = vmatpush1.bf16.msra.mxu0 %v198
  %216 = vmatprep.subr.bf16.mxu0 0
  %217 = vmatpush1.bf16.msra.mxu0 %v199
  %218 = vmatprep.subr.bf16.mxu0 0
  %219 = vmatpush1.bf16.msra.mxu0 %v200
  %220 = vmatprep.subr.bf16.mxu0 0
  %221 = vmatpush1.bf16.msra.mxu0 %v201
  %222 = vmatprep.subr.bf16.mxu0 0
  %223 = vmatpush1.bf16.msra.mxu0 %v202
  %224 = vmatprep.subr.bf16.mxu0 0
  %225 = vmatpush1.bf16.msra.mxu0 %v203
  %226 = vmatprep.subr.bf16.mxu0 0
  %227 = vmatpush1.bf16.msra.mxu0 %v204
  %228 = vmatprep.subr.bf16.mxu0 0
  %229 = vmatpush1.bf16.msra.mxu0 %v205
  %230 = vmatprep.subr.bf16.mxu0 0
  %231 = vmatpush1.bf16.msra.mxu0 0
  %232 = vmatprep.subr.bf16.mxu0 0
  %233 = vmatpush1.bf16.msra.mxu0 0
  %234 = vmatprep.subr.bf16.mxu0 0
  %235 = vmatpush1.bf16.msra.mxu0 0
  %236 = vmatprep.subr.bf16.mxu0 0
  %237 = vmatpush1.bf16.msra.mxu0 0
  %238 = vmatprep.subr.bf16.mxu0 0
  %239 = vmatpush1.bf16.msra.mxu0 0
  %240 = vmatprep.subr.bf16.mxu0 0
  %241 = vmatpush1.bf16.msra.mxu0 0
  %242 = vmatprep.subr.bf16.mxu0 0
  %243 = vmatpush1.bf16.msra.mxu0 0
  %244 = vmatprep.subr.bf16.mxu0 0
  %245 = vmatpush1.bf16.msra.mxu0 0
  %246 = vmatprep.mubr.bf16.mxu0 0
  %247 = vmatmul.mubr.bf16.gmra.mrb[0].mxu0 %v134
  %v248 = vpop.f32.mrb[0].mxu0
  %v249 = vadd.f32 %v68, %v248
  %v250 = vpop.f32.mrb[0].mxu0
  %v251 = vpop.f32.mrb[0].mxu0
  %v252 = vadd.f32 %v68, %v251
  %v253 = vpop.f32.mrb[0].mxu0
  %254 = vmatprep.mubr.bf16.mxu0 0
  %255 = vmatmul.mubr.bf16.gmra.mrb[0].mxu0 %v135
  %v256 = vpop.f32.mrb[0].mxu0
  %v257 = vadd.f32 %v68, %v256
  %v258 = vpop.f32.mrb[0].mxu0
  %v259 = vpop.f32.mrb[0].mxu0
  %v260 = vadd.f32 %v68, %v259
  %v261 = vpop.f32.mrb[0].mxu0
  %262 = vmatprep.mubr.bf16.mxu0 0
  %263 = vmatmul.mubr.bf16.gmra.mrb[0].mxu0 %v136
  %v264 = vpop.f32.mrb[0].mxu0
  %v265 = vadd.f32 %v68, %v264
  %v266 = vpop.f32.mrb[0].mxu0
  %v267 = vpop.f32.mrb[0].mxu0
  %v268 = vadd.f32 %v68, %v267
  %v269 = vpop.f32.mrb[0].mxu0
  %270 = vmatprep.mubr.bf16.mxu0 0
  %271 = vmatmul.mubr.bf16.gmra.mrb[0].mxu0 %v137
  %v272 = vpop.f32.mrb[0].mxu0
  %v273 = vadd.f32 %v68, %v272
  %v274 = vpop.f32.mrb[0].mxu0
  %v275 = vpop.f32.mrb[0].mxu0
  %v276 = vadd.f32 %v68, %v275
  %v277 = vpop.f32.mrb[0].mxu0
  %278 = vmatprep.mubr.bf16.mxu0 0
  %279 = vmatmul.mubr.bf16.gmra.mrb[0].mxu0 %v138
  %v280 = vpop.f32.mrb[0].mxu0
  %v281 = vadd.f32 %v68, %v280
  %v282 = vpop.f32.mrb[0].mxu0
  %v283 = vpop.f32.mrb[0].mxu0
  %v284 = vadd.f32 %v68, %v283
  %v285 = vpop.f32.mrb[0].mxu0
  %286 = vmatprep.mubr.bf16.mxu0 0
  %287 = vmatmul.mubr.bf16.gmra.mrb[0].mxu0 %v139
  %v288 = vpop.f32.mrb[0].mxu0
  %v289 = vadd.f32 %v68, %v288
  %v290 = vpop.f32.mrb[0].mxu0
  %v291 = vpop.f32.mrb[0].mxu0
  %v292 = vadd.f32 %v68, %v291
  %v293 = vpop.f32.mrb[0].mxu0
  %294 = vmatprep.mubr.bf16.mxu0 0
  %295 = vmatmul.mubr.bf16.gmra.mrb[0].mxu0 %v140
  %v296 = vpop.f32.mrb[0].mxu0
  %v297 = vadd.f32 %v68, %v296
  %v298 = vpop.f32.mrb[0].mxu0
  %v299 = vpop.f32.mrb[0].mxu0
  %v300 = vadd.f32 %v68, %v299
  %v301 = vpop.f32.mrb[0].mxu0
  %302 = vmatprep.mubr.bf16.mxu0 0
  %303 = vmatmul.mubr.bf16.gmra.mrb[0].mxu0 %v141
  %v304 = vpop.f32.mrb[0].mxu0
  %v305 = vadd.f32 %v68, %v304
  %v306 = vpop.f32.mrb[0].mxu0
  %v307 = vpop.f32.mrb[0].mxu0
  %v308 = vadd.f32 %v68, %v307
  %v309 = vpop.f32.mrb[0].mxu0
  %310 = vmatprep.mubr.bf16.mxu0 0
  %311 = vmatmul.mubr.bf16.gmra.mrb[0].mxu0 %v142
  %v312 = vpop.f32.mrb[0].mxu0
  %v313 = vadd.f32 %v68, %v312
  %v314 = vpop.f32.mrb[0].mxu0
  %v315 = vpop.f32.mrb[0].mxu0
  %v316 = vadd.f32 %v68, %v315
  %v317 = vpop.f32.mrb[0].mxu0
  %318 = vmatprep.mubr.bf16.mxu0 0
  %319 = vmatmul.mubr.bf16.gmra.mrb[0].mxu0 %v143
  %v320 = vpop.f32.mrb[0].mxu0
  %v321 = vadd.f32 %v68, %v320
  %v322 = vpop.f32.mrb[0].mxu0
  %v323 = vpop.f32.mrb[0].mxu0
  %v324 = vadd.f32 %v68, %v323
  %v325 = vpop.f32.mrb[0].mxu0
  %326 = vmatprep.mubr.bf16.mxu0 0
  %327 = vmatmul.mubr.bf16.gmra.mrb[0].mxu0 %v144
  %v328 = vpop.f32.mrb[0].mxu0
  %v329 = vadd.f32 %v68, %v328
  %v330 = vpop.f32.mrb[0].mxu0
  %v331 = vpop.f32.mrb[0].mxu0
  %v332 = vadd.f32 %v68, %v331
  %v333 = vpop.f32.mrb[0].mxu0
  %334 = vmatprep.mubr.bf16.mxu0 0
  %335 = vmatmul.mubr.bf16.gmra.mrb[0].mxu0 %v145
  %v336 = vpop.f32.mrb[0].mxu0
  %v337 = vadd.f32 %v68, %v336
  %v338 = vpop.f32.mrb[0].mxu0
  %v339 = vpop.f32.mrb[0].mxu0
  %v340 = vadd.f32 %v68, %v339
  %v341 = vpop.f32.mrb[0].mxu0
  %342 = vmatprep.mubr.bf16.mxu0 0
  %343 = vmatmul.mubr.bf16.gmra.mrb[0].mxu0 %v146
  %v344 = vpop.f32.mrb[0].mxu0
  %v345 = vadd.f32 %v68, %v344
  %v346 = vpop.f32.mrb[0].mxu0
  %v347 = vpop.f32.mrb[0].mxu0
  %v348 = vadd.f32 %v68, %v347
  %v349 = vpop.f32.mrb[0].mxu0
  %350 = vmatprep.mubr.bf16.mxu0 0
  %351 = vmatmul.mubr.bf16.gmra.mrb[0].mxu0 %v147
  %v352 = vpop.f32.mrb[0].mxu0
  %v353 = vadd.f32 %v68, %v352
  %v354 = vpop.f32.mrb[0].mxu0
  %v355 = vpop.f32.mrb[0].mxu0
  %v356 = vadd.f32 %v68, %v355
  %v357 = vpop.f32.mrb[0].mxu0
  %358 = vmatprep.mubr.bf16.mxu0 0
  %359 = vmatmul.mubr.bf16.gmra.mrb[0].mxu0 %v148
  %v360 = vpop.f32.mrb[0].mxu0
  %v361 = vadd.f32 %v68, %v360
  %v362 = vpop.f32.mrb[0].mxu0
  %v363 = vpop.f32.mrb[0].mxu0
  %v364 = vadd.f32 %v68, %v363
  %v365 = vpop.f32.mrb[0].mxu0
  %366 = vmatprep.mubr.bf16.mxu0 0
  %367 = vmatmul.mubr.bf16.gmra.mrb[0].mxu0 %v149
  %v368 = vpop.f32.mrb[0].mxu0
  %v369 = vadd.f32 %v68, %v368
  %v370 = vpop.f32.mrb[0].mxu0
  %v371 = vpop.f32.mrb[0].mxu0
  %v372 = vadd.f32 %v68, %v371
  %v373 = vpop.f32.mrb[0].mxu0
  %374 = vdwg.mxu0
  %v375 = vmax.f32 %v249, 0.0
  %v376 = vmax.f32 %v252, 0.0
  %v377 = vmax.f32 %v257, 0.0
  %v378 = vmax.f32 %v260, 0.0
  %v379 = vmax.f32 %v265, 0.0
  %v380 = vmax.f32 %v268, 0.0
  %v381 = vmax.f32 %v273, 0.0
  %v382 = vmax.f32 %v276, 0.0
  %v383 = vmax.f32 %v281, 0.0
  %v384 = vmax.f32 %v284, 0.0
  %v385 = vmax.f32 %v289, 0.0
  %v386 = vmax.f32 %v292, 0.0
  %v387 = vmax.f32 %v297, 0.0
  %v388 = vmax.f32 %v300, 0.0
  %v389 = vmax.f32 %v305, 0.0
  %v390 = vmax.f32 %v308, 0.0
  %v391 = vmax.f32 %v313, 0.0
  %v392 = vmax.f32 %v316, 0.0
  %v393 = vmax.f32 %v321, 0.0
  %v394 = vmax.f32 %v324, 0.0
  %v395 = vmax.f32 %v329, 0.0
  %v396 = vmax.f32 %v332, 0.0
  %v397 = vmax.f32 %v337, 0.0
  %v398 = vmax.f32 %v340, 0.0
  %v399 = vmax.f32 %v345, 0.0
  %v400 = vmax.f32 %v348, 0.0
  %v401 = vmax.f32 %v353, 0.0
  %v402 = vmax.f32 %v356, 0.0
  %v403 = vmax.f32 %v361, 0.0
  %v404 = vmax.f32 %v364, 0.0
  %v405 = vmax.f32 %v369, 0.0
  %v406 = vmax.f32 %v372, 0.0
  %v407 = vpack.c.bf16 %v376, %v375
  %v408 = vpack.c.bf16 %v378, %v377
  %v409 = vpack.c.bf16 %v380, %v379
  %v410 = vpack.c.bf16 %v382, %v381
  %v411 = vpack.c.bf16 %v384, %v383
  %v412 = vpack.c.bf16 %v386, %v385
  %v413 = vpack.c.bf16 %v388, %v387
  %v414 = vpack.c.bf16 %v390, %v389
  %v415 = vpack.c.bf16 %v392, %v391
  %v416 = vpack.c.bf16 %v394, %v393
  %v417 = vpack.c.bf16 %v396, %v395
  %v418 = vpack.c.bf16 %v398, %v397
  %v419 = vpack.c.bf16 %v400, %v399
  %v420 = vpack.c.bf16 %v402, %v401
  %v421 = vpack.c.bf16 %v404, %v403
  %v422 = vpack.c.bf16 %v406, %v405
  %s423 = scalar_lea.vmem %s1, 64
  %v424 = vld [vmem:[%s423] sm:$0xf]
  %v425 = vld [vmem:[%s423 + $0x4] sm:$0xf]
  %v426 = vld [vmem:[%s423 + $0x8] sm:$0xf]
  %v427 = vld [vmem:[%s423 + $0xc] sm:$0xf]
  %v428 = vld [vmem:[%s423 + $0x10] sm:$0xf]
  %v429 = vld [vmem:[%s423 + $0x14] sm:$0xf]
  %v430 = vld [vmem:[%s423 + $0x18] sm:$0xf]
  %v431 = vld [vmem:[%s423 + $0x1c] sm:$0xf]
  %v432 = vld [vmem:[%s423 + $0x20] sm:$0xf]
  %v433 = vld [vmem:[%s423 + $0x24] sm:$0xf]
  %v434 = vld [vmem:[%s423 + $0x28] sm:$0xf]
  %v435 = vld [vmem:[%s423 + $0x2c] sm:$0xf]
  %v436 = vld [vmem:[%s423 + $0x30] sm:$0xf]
  %v437 = vld [vmem:[%s423 + $0x34] sm:$0xf]
  %v438 = vld [vmem:[%s423 + $0x38] sm:$0xf]
  %v439 = vld [vmem:[%s423 + $0x3c] sm:$0xf]
  %s440 = scalar_lea.vmem %s2, 1
  %v441 = vld [vmem:[%s440] sm:$0x1]
  %v443 = vlaneseq
  %v444 = vshrl.u32 %v443, 7
  %v445 = vsub.s32 0, %v444
  %v446 = vrot.slane %v441, %v445
  %v464 = vunpack.c.l.b16 %v424
  %v465 = vunpack.c.l.b16 %v425
  %v466 = vunpack.c.l.b16 %v426
  %v467 = vunpack.c.l.b16 %v427
  %v468 = vunpack.c.l.b16 %v428
  %v469 = vunpack.c.l.b16 %v429
  %v470 = vunpack.c.l.b16 %v430
  %v471 = vunpack.c.l.b16 %v431
  %v472 = vunpack.c.l.b16 %v432
  %v473 = vunpack.c.l.b16 %v433
  %v474 = vunpack.c.l.b16 %v434
  %v475 = vunpack.c.l.b16 %v435
  %v476 = vunpack.c.l.b16 %v436
  %v477 = vunpack.c.l.b16 %v437
  %v478 = vunpack.c.l.b16 %v438
  %v479 = vunpack.c.l.b16 %v439
  %v480 = vpack.c.b16 %v465, %v464
  %v481 = vpack.c.b16 %v467, %v466
  %v482 = vpack.c.b16 %v469, %v468
  %v483 = vpack.c.b16 %v471, %v470
  %v484 = vpack.c.b16 %v473, %v472
  %v485 = vpack.c.b16 %v475, %v474
  %v486 = vpack.c.b16 %v477, %v476
  %v487 = vpack.c.b16 %v479, %v478
  %496 = vmatprep.subr.bf16.mxu0 0
  %497 = vmatpush1.bf16.msra.mxu0 %v480
  %498 = vmatprep.subr.bf16.mxu0 0
  %499 = vmatpush1.bf16.msra.mxu0 %v481
  %500 = vmatprep.subr.bf16.mxu0 0
  %501 = vmatpush1.bf16.msra.mxu0 %v482
  %502 = vmatprep.subr.bf16.mxu0 0
  %503 = vmatpush1.bf16.msra.mxu0 %v483
  %504 = vmatprep.subr.bf16.mxu0 0
  %505 = vmatpush1.bf16.msra.mxu0 %v484
  %506 = vmatprep.subr.bf16.mxu0 0
  %507 = vmatpush1.bf16.msra.mxu0 %v485
  %508 = vmatprep.subr.bf16.mxu0 0
  %509 = vmatpush1.bf16.msra.mxu0 %v486
  %510 = vmatprep.subr.bf16.mxu0 0
  %511 = vmatpush1.bf16.msra.mxu0 %v487
  %512 = vmatprep.subr.bf16.mxu0 0
  %513 = vmatpush1.bf16.msra.mxu0 0
  %514 = vmatprep.subr.bf16.mxu0 0
  %515 = vmatpush1.bf16.msra.mxu0 0
  %516 = vmatprep.subr.bf16.mxu0 0
  %517 = vmatpush1.bf16.msra.mxu0 0
  %518 = vmatprep.subr.bf16.mxu0 0
  %519 = vmatpush1.bf16.msra.mxu0 0
  %520 = vmatprep.subr.bf16.mxu0 0
  %521 = vmatpush1.bf16.msra.mxu0 0
  %522 = vmatprep.subr.bf16.mxu0 0
  %523 = vmatpush1.bf16.msra.mxu0 0
  %524 = vmatprep.subr.bf16.mxu0 0
  %525 = vmatpush1.bf16.msra.mxu0 0
  %526 = vmatprep.subr.bf16.mxu0 0
  %527 = vmatpush1.bf16.msra.mxu0 0
  %528 = vmatprep.mubr.bf16.mxu0 0
  %529 = vmatmul.mubr.bf16.gmra.mrb[0].mxu0 %v407
  %v530 = vpop.f32.mrb[0].mxu0
  %v531 = vadd.f32 %v446, %v530
  %v532 = vpop.f32.mrb[0].mxu0
  %v533 = vpop.f32.mrb[0].mxu0
  %v534 = vadd.f32 %v446, %v533
  %v535 = vpop.f32.mrb[0].mxu0
  %536 = vmatprep.mubr.bf16.mxu0 0
  %537 = vmatmul.mubr.bf16.gmra.mrb[0].mxu0 %v408
  %v538 = vpop.f32.mrb[0].mxu0
  %v539 = vadd.f32 %v446, %v538
  %v540 = vpop.f32.mrb[0].mxu0
  %v541 = vpop.f32.mrb[0].mxu0
  %v542 = vadd.f32 %v446, %v541
  %v543 = vpop.f32.mrb[0].mxu0
  %544 = vmatprep.mubr.bf16.mxu0 0
  %545 = vmatmul.mubr.bf16.gmra.mrb[0].mxu0 %v409
  %v546 = vpop.f32.mrb[0].mxu0
  %v547 = vadd.f32 %v446, %v546
  %v548 = vpop.f32.mrb[0].mxu0
  %v549 = vpop.f32.mrb[0].mxu0
  %v550 = vadd.f32 %v446, %v549
  %v551 = vpop.f32.mrb[0].mxu0
  %552 = vmatprep.mubr.bf16.mxu0 0
  %553 = vmatmul.mubr.bf16.gmra.mrb[0].mxu0 %v410
  %v554 = vpop.f32.mrb[0].mxu0
  %v555 = vadd.f32 %v446, %v554
  %v556 = vpop.f32.mrb[0].mxu0
  %v557 = vpop.f32.mrb[0].mxu0
  %v558 = vadd.f32 %v446, %v557
  %v559 = vpop.f32.mrb[0].mxu0
  %560 = vmatprep.mubr.bf16.mxu0 0
  %561 = vmatmul.mubr.bf16.gmra.mrb[0].mxu0 %v411
  %v562 = vpop.f32.mrb[0].mxu0
  %v563 = vadd.f32 %v446, %v562
  %v564 = vpop.f32.mrb[0].mxu0
  %v565 = vpop.f32.mrb[0].mxu0
  %v566 = vadd.f32 %v446, %v565
  %v567 = vpop.f32.mrb[0].mxu0
  %568 = vmatprep.mubr.bf16.mxu0 0
  %569 = vmatmul.mubr.bf16.gmra.mrb[0].mxu0 %v412
  %v570 = vpop.f32.mrb[0].mxu0
  %v571 = vadd.f32 %v446, %v570
  %v572 = vpop.f32.mrb[0].mxu0
  %v573 = vpop.f32.mrb[0].mxu0
  %v574 = vadd.f32 %v446, %v573
  %v575 = vpop.f32.mrb[0].mxu0
  %576 = vmatprep.mubr.bf16.mxu0 0
  %577 = vmatmul.mubr.bf16.gmra.mrb[0].mxu0 %v413
  %v578 = vpop.f32.mrb[0].mxu0
  %v579 = vadd.f32 %v446, %v578
  %v580 = vpop.f32.mrb[0].mxu0
  %v581 = vpop.f32.mrb[0].mxu0
  %v582 = vadd.f32 %v446, %v581
  %v583 = vpop.f32.mrb[0].mxu0
  %584 = vmatprep.mubr.bf16.mxu0 0
  %585 = vmatmul.mubr.bf16.gmra.mrb[0].mxu0 %v414
  %v586 = vpop.f32.mrb[0].mxu0
  %v587 = vadd.f32 %v446, %v586
  %v588 = vpop.f32.mrb[0].mxu0
  %v589 = vpop.f32.mrb[0].mxu0
  %v590 = vadd.f32 %v446, %v589
  %v591 = vpop.f32.mrb[0].mxu0
  %592 = vmatprep.mubr.bf16.mxu0 0
  %593 = vmatmul.mubr.bf16.gmra.mrb[0].mxu0 %v415
  %v594 = vpop.f32.mrb[0].mxu0
  %v595 = vadd.f32 %v446, %v594
  %v596 = vpop.f32.mrb[0].mxu0
  %v597 = vpop.f32.mrb[0].mxu0
  %v598 = vadd.f32 %v446, %v597
  %v599 = vpop.f32.mrb[0].mxu0
  %600 = vmatprep.mubr.bf16.mxu0 0
  %601 = vmatmul.mubr.bf16.gmra.mrb[0].mxu0 %v416
  %v602 = vpop.f32.mrb[0].mxu0
  %v603 = vadd.f32 %v446, %v602
  %v604 = vpop.f32.mrb[0].mxu0
  %v605 = vpop.f32.mrb[0].mxu0
  %v606 = vadd.f32 %v446, %v605
  %v607 = vpop.f32.mrb[0].mxu0
  %608 = vmatprep.mubr.bf16.mxu0 0
  %609 = vmatmul.mubr.bf16.gmra.mrb[0].mxu0 %v417
  %v610 = vpop.f32.mrb[0].mxu0
  %v611 = vadd.f32 %v446, %v610
  %v612 = vpop.f32.mrb[0].mxu0
  %v613 = vpop.f32.mrb[0].mxu0
  %v614 = vadd.f32 %v446, %v613
  %v615 = vpop.f32.mrb[0].mxu0
  %616 = vmatprep.mubr.bf16.mxu0 0
  %617 = vmatmul.mubr.bf16.gmra.mrb[0].mxu0 %v418
  %v618 = vpop.f32.mrb[0].mxu0
  %v619 = vadd.f32 %v446, %v618
  %v620 = vpop.f32.mrb[0].mxu0
  %v621 = vpop.f32.mrb[0].mxu0
  %v622 = vadd.f32 %v446, %v621
  %v623 = vpop.f32.mrb[0].mxu0
  %624 = vmatprep.mubr.bf16.mxu0 0
  %625 = vmatmul.mubr.bf16.gmra.mrb[0].mxu0 %v419
  %v626 = vpop.f32.mrb[0].mxu0
  %v627 = vadd.f32 %v446, %v626
  %v628 = vpop.f32.mrb[0].mxu0
  %v629 = vpop.f32.mrb[0].mxu0
  %v630 = vadd.f32 %v446, %v629
  %v631 = vpop.f32.mrb[0].mxu0
  %632 = vmatprep.mubr.bf16.mxu0 0
  %633 = vmatmul.mubr.bf16.gmra.mrb[0].mxu0 %v420
  %v634 = vpop.f32.mrb[0].mxu0
  %v635 = vadd.f32 %v446, %v634
  %v636 = vpop.f32.mrb[0].mxu0
  %v637 = vpop.f32.mrb[0].mxu0
  %v638 = vadd.f32 %v446, %v637
  %v639 = vpop.f32.mrb[0].mxu0
  %640 = vmatprep.mubr.bf16.mxu0 0
  %641 = vmatmul.mubr.bf16.gmra.mrb[0].mxu0 %v421
  %v642 = vpop.f32.mrb[0].mxu0
  %v643 = vadd.f32 %v446, %v642
  %v644 = vpop.f32.mrb[0].mxu0
  %v645 = vpop.f32.mrb[0].mxu0
  %v646 = vadd.f32 %v446, %v645
  %v647 = vpop.f32.mrb[0].mxu0
  %648 = vmatprep.mubr.bf16.mxu0 0
  %649 = vmatmul.mubr.bf16.gmra.mrb[0].mxu0 %v422
  %v650 = vpop.f32.mrb[0].mxu0
  %v651 = vadd.f32 %v446, %v650
  %v652 = vpop.f32.mrb[0].mxu0
  %v653 = vpop.f32.mrb[0].mxu0
  %v654 = vadd.f32 %v446, %v653
  %v655 = vpop.f32.mrb[0].mxu0
  %656 = vdwg.mxu0
  %v657 = vmax.f32 %v531, 0.0
  %v658 = vmax.f32 %v534, 0.0
  %v659 = vmax.f32 %v539, 0.0
  %v660 = vmax.f32 %v542, 0.0
  %v661 = vmax.f32 %v547, 0.0
  %v662 = vmax.f32 %v550, 0.0
  %v663 = vmax.f32 %v555, 0.0
  %v664 = vmax.f32 %v558, 0.0
  %v665 = vmax.f32 %v563, 0.0
  %v666 = vmax.f32 %v566, 0.0
  %v667 = vmax.f32 %v571, 0.0
  %v668 = vmax.f32 %v574, 0.0
  %v669 = vmax.f32 %v579, 0.0
  %v670 = vmax.f32 %v582, 0.0
  %v671 = vmax.f32 %v587, 0.0
  %v672 = vmax.f32 %v590, 0.0
  %v673 = vmax.f32 %v595, 0.0
  %v674 = vmax.f32 %v598, 0.0
  %v675 = vmax.f32 %v603, 0.0
  %v676 = vmax.f32 %v606, 0.0
  %v677 = vmax.f32 %v611, 0.0
  %v678 = vmax.f32 %v614, 0.0
  %v679 = vmax.f32 %v619, 0.0
  %v680 = vmax.f32 %v622, 0.0
  %v681 = vmax.f32 %v627, 0.0
  %v682 = vmax.f32 %v630, 0.0
  %v683 = vmax.f32 %v635, 0.0
  %v684 = vmax.f32 %v638, 0.0
  %v685 = vmax.f32 %v643, 0.0
  %v686 = vmax.f32 %v646, 0.0
  %v687 = vmax.f32 %v651, 0.0
  %v688 = vmax.f32 %v654, 0.0
  %v689 = vpack.c.bf16 %v658, %v657
  %v690 = vpack.c.bf16 %v660, %v659
  %v691 = vpack.c.bf16 %v662, %v661
  %v692 = vpack.c.bf16 %v664, %v663
  %v693 = vpack.c.bf16 %v666, %v665
  %v694 = vpack.c.bf16 %v668, %v667
  %v695 = vpack.c.bf16 %v670, %v669
  %v696 = vpack.c.bf16 %v672, %v671
  %v697 = vpack.c.bf16 %v674, %v673
  %v698 = vpack.c.bf16 %v676, %v675
  %v699 = vpack.c.bf16 %v678, %v677
  %v700 = vpack.c.bf16 %v680, %v679
  %v701 = vpack.c.bf16 %v682, %v681
  %v702 = vpack.c.bf16 %v684, %v683
  %v703 = vpack.c.bf16 %v686, %v685
  %v704 = vpack.c.bf16 %v688, %v687
  %v721 = vunpack.c.l.b16 %v689
  %v722 = vunpack.c.h.b16 %v689
  %v723 = vunpack.c.l.b16 %v690
  %v724 = vunpack.c.h.b16 %v690
  %v725 = vunpack.c.l.b16 %v691
  %v726 = vunpack.c.h.b16 %v691
  %v727 = vunpack.c.l.b16 %v692
  %v728 = vunpack.c.h.b16 %v692
  %v729 = vunpack.c.l.b16 %v693
  %v730 = vunpack.c.h.b16 %v693
  %v731 = vunpack.c.l.b16 %v694
  %v732 = vunpack.c.h.b16 %v694
  %v733 = vunpack.c.l.b16 %v695
  %v734 = vunpack.c.h.b16 %v695
  %v735 = vunpack.c.l.b16 %v696
  %v736 = vunpack.c.h.b16 %v696
  %v737 = vunpack.c.l.b16 %v697
  %v738 = vunpack.c.h.b16 %v697
  %v739 = vunpack.c.l.b16 %v698
  %v740 = vunpack.c.h.b16 %v698
  %v741 = vunpack.c.l.b16 %v699
  %v742 = vunpack.c.h.b16 %v699
  %v743 = vunpack.c.l.b16 %v700
  %v744 = vunpack.c.h.b16 %v700
  %v745 = vunpack.c.l.b16 %v701
  %v746 = vunpack.c.h.b16 %v701
  %v747 = vunpack.c.l.b16 %v702
  %v748 = vunpack.c.h.b16 %v702
  %v749 = vunpack.c.l.b16 %v703
  %v750 = vunpack.c.h.b16 %v703
  %v751 = vunpack.c.l.b16 %v704
  %v752 = vunpack.c.h.b16 %v704
  %v753 = vpack.c.b16 %v721, %v721
  %v754 = vpack.c.b16 %v722, %v722
  %v755 = vpack.c.b16 %v723, %v723
  %v756 = vpack.c.b16 %v724, %v724
  %v757 = vpack.c.b16 %v725, %v725
  %v758 = vpack.c.b16 %v726, %v726
  %v759 = vpack.c.b16 %v727, %v727
  %v760 = vpack.c.b16 %v728, %v728
  %v761 = vpack.c.b16 %v729, %v729
  %v762 = vpack.c.b16 %v730, %v730
  %v763 = vpack.c.b16 %v731, %v731
  %v764 = vpack.c.b16 %v732, %v732
  %v765 = vpack.c.b16 %v733, %v733
  %v766 = vpack.c.b16 %v734, %v734
  %v767 = vpack.c.b16 %v735, %v735
  %v768 = vpack.c.b16 %v736, %v736
  %v769 = vpack.c.b16 %v737, %v737
  %v770 = vpack.c.b16 %v738, %v738
  %v771 = vpack.c.b16 %v739, %v739
  %v772 = vpack.c.b16 %v740, %v740
  %v773 = vpack.c.b16 %v741, %v741
  %v774 = vpack.c.b16 %v742, %v742
  %v775 = vpack.c.b16 %v743, %v743
  %v776 = vpack.c.b16 %v744, %v744
  %v777 = vpack.c.b16 %v745, %v745
  %v778 = vpack.c.b16 %v746, %v746
  %v779 = vpack.c.b16 %v747, %v747
  %v780 = vpack.c.b16 %v748, %v748
  %v781 = vpack.c.b16 %v749, %v749
  %v782 = vpack.c.b16 %v750, %v750
  %v783 = vpack.c.b16 %v751, %v751
  %v784 = vpack.c.b16 %v752, %v752
  %817 = vst [vmem:[%s3] sm:$0xf] %v753
  %818 = vst [vmem:[%s3 + $0x4] sm:$0xf] %v754
  %819 = vst [vmem:[%s3 + $0x8] sm:$0xf] %v755
  %820 = vst [vmem:[%s3 + $0xc] sm:$0xf] %v756
  %821 = vst [vmem:[%s3 + $0x10] sm:$0xf] %v757
  %822 = vst [vmem:[%s3 + $0x14] sm:$0xf] %v758
  %823 = vst [vmem:[%s3 + $0x18] sm:$0xf] %v759
  %824 = vst [vmem:[%s3 + $0x1c] sm:$0xf] %v760
  %825 = vst [vmem:[%s3 + $0x20] sm:$0xf] %v761
  %826 = vst [vmem:[%s3 + $0x24] sm:$0xf] %v762
  %827 = vst [vmem:[%s3 + $0x28] sm:$0xf] %v763
  %828 = vst [vmem:[%s3 + $0x2c] sm:$0xf] %v764
  %829 = vst [vmem:[%s3 + $0x30] sm:$0xf] %v765
  %830 = vst [vmem:[%s3 + $0x34] sm:$0xf] %v766
  %831 = vst [vmem:[%s3 + $0x38] sm:$0xf] %v767
  %832 = vst [vmem:[%s3 + $0x3c] sm:$0xf] %v768
  %833 = vst [vmem:[%s3 + $0x40] sm:$0xf] %v769
  %834 = vst [vmem:[%s3 + $0x44] sm:$0xf] %v770
  %835 = vst [vmem:[%s3 + $0x48] sm:$0xf] %v771
  %836 = vst [vmem:[%s3 + $0x4c] sm:$0xf] %v772
  %837 = vst [vmem:[%s3 + $0x50] sm:$0xf] %v773
  %838 = vst [vmem:[%s3 + $0x54] sm:$0xf] %v774
  %839 = vst [vmem:[%s3 + $0x58] sm:$0xf] %v775
  %840 = vst [vmem:[%s3 + $0x5c] sm:$0xf] %v776
  %841 = vst [vmem:[%s3 + $0x60] sm:$0xf] %v777
  %842 = vst [vmem:[%s3 + $0x64] sm:$0xf] %v778
  %843 = vst [vmem:[%s3 + $0x68] sm:$0xf] %v779
  %844 = vst [vmem:[%s3 + $0x6c] sm:$0xf] %v780
  %845 = vst [vmem:[%s3 + $0x70] sm:$0xf] %v781
  %846 = vst [vmem:[%s3 + $0x74] sm:$0xf] %v782
  %847 = vst [vmem:[%s3 + $0x78] sm:$0xf] %v783
  %848 = vst [vmem:[%s3 + $0x7c] sm:$0xf] %v784
  // Predicated region
  $region14: #{generator_forward.1} parent=0 // pred_check
    _
  $region15: #{generator_forward.1} parent=0 // pred_check_branch
    %850 = sbr.rel (0) target = $region17
  $region16: #{generator_forward.1} parent=0 // pred_region
    _
  $region17: #{generator_forward.1} parent=0 // pred_fallthru
    _
  // Predicated region
  $region18: #{generator_forward.1} parent=0 // pred_check
    _
  $region19: #{generator_forward.1} parent=0 // pred_check_branch
    %852 = sbr.rel (0) target = $region21
  $region20: #{generator_forward.1} parent=0 // pred_region
    _
  $region21: #{generator_forward.1} parent=0 // pred_fallthru
    _

</llo_original>
